<compile_context>
chip_gen: v7x
topology: tpu7x:2x2x1
jax: 0.10.0
libtpu: 0.0.40
codegen_flags: <defaults>
</compile_context>

<pallas_src>
import functools

import numpy as np
import jax
import jax.numpy as jnp
from jax.experimental import pallas as pl
from jax.experimental.pallas import tpu as pltpu


def _conv_kernel(x_ref, w_ref, o_ref, *, K, stride, Hb, Wo):
    """One (image, output-row-block).

    x_ref: stride == 1 -> (Cin, Hp, Wp)         whole padded image
           stride  > 1 -> (Cin, s, s, Hq, Wq)   phase-split padded image
    w_ref: (Cout, K*K*Cin)    weights, [(kh, kw) major, cin minor] columns
    o_ref: (Cout, Hb*Wo)      lane axis = Hb*Wo  (lane-dense store)
    """
    Cin = x_ref.shape[0]
    rb = pl.program_id(1)
    h0 = pl.multiple_of(rb * Hb, Hb)          # first output row of this block

    # Build the im2col operand: (K*K*Cin, Hb*Wo).
    cols = []
    for kh in range(K):
        for kw in range(K):
            if stride == 1:
                patch = x_ref[:, pl.ds(h0 + kh, Hb), pl.ds(kw, Wo)]
            else:
                rh, qh = kh % stride, kh // stride
                rw, qw = kw % stride, kw // stride
                patch = x_ref[:, rh, rw, pl.ds(h0 + qh, Hb), pl.ds(qw, Wo)]
            cols.append(patch.reshape(Cin, Hb * Wo))
    col = jnp.concatenate(cols, axis=0)       # (K*K*Cin, Hb*Wo)

    lhs = w_ref[...]
    if lhs.dtype != col.dtype:
        col = col.astype(lhs.dtype)           # bf16 operands for large-channel layers
    # Single MXU matmul with a K*K*Cin-wide contraction, f32 accumulation.
    o_ref[...] = jnp.dot(lhs, col, preferred_element_type=jnp.float32).astype(o_ref.dtype)


def _choose_hb(Ho, Wo, Cout, itemsize):
    """Output-row block size: Hb | Ho, Hb*Wo a multiple of 128 (lane-dense stores),
    output tile bounded in VMEM, and >1 block per image when possible."""
    cap_elems = max(128, (2 * 1024 * 1024) // max(1, Cout * itemsize))
    candidates = [
        hb for hb in range(1, Ho)
        if Ho % hb == 0 and (hb * Wo) % 128 == 0 and hb * Wo <= cap_elems
    ]
    if candidates:
        return max(candidates)
    return Ho


def _round_up(a, m):
    return -(-a // m) * m


def conv2d_same(x: jnp.ndarray, w: jnp.ndarray, *, stride: int = 1) -> jnp.ndarray:
    """Conv2d with kernel (K,K), stride, padding=(K-1)//2, no bias.  x: NCHW, w: OIHW."""
    N, Cin, H, W = x.shape
    Cout, Cin2, K, K2 = w.shape
    assert Cin == Cin2 and K == K2

    s = int(stride)
    p = (K - 1) // 2
    Hp, Wp = H + 2 * p, W + 2 * p
    Ho = (Hp - K) // s + 1
    Wo = (Wp - K) // s + 1

    # Weight matrix (Cout, K*K*Cin) with columns ordered [(kh, kw) major, cin minor]
    # to match the im2col row order built in the kernel.
    w_mat = w.transpose(0, 2, 3, 1).reshape(Cout, K * K * Cin)
    use_bf16 = (Cin >= 64 and Cout >= 64 and w_mat.dtype == jnp.float32)
    if use_bf16:
        w_mat = w_mat.astype(jnp.bfloat16)

    if s == 1:
        # NCHW straight in: W (lanes) / H (sublanes) / Cin leading. No transposes.
        x_in = jnp.pad(x, ((0, 0), (0, 0), (p, p), (p, p)))           # (N, Cin, Hp, Wp)
        in_block = (None, Cin, Hp, Wp)
        in_map = lambda n, rb: (n, 0, 0, 0)
    else:
        # Phase-split along H and W so every in-kernel slice is contiguous
        # (no strided pl.ds on the lane/sublane axes).
        Hq, Wq = -(-Hp // s), -(-Wp // s)
        x_pad = jnp.pad(
            x, ((0, 0), (0, 0), (p, p + Hq * s - Hp), (p, p + Wq * s - Wp)))
        # x_in[n, c, rh, rw, hq, wq] = x_pad[n, c, hq*s + rh, wq*s + rw]
        x_in = x_pad.reshape(N, Cin, Hq, s, Wq, s).transpose(0, 1, 3, 5, 2, 4)
        in_block = (None, Cin, s, s, Hq, Wq)
        in_map = lambda n, rb: (n, 0, 0, 0, 0, 0)

    itemsize = np.dtype(x.dtype).itemsize
    Hb = _choose_hb(Ho, Wo, Cout, itemsize)
    n_hblk = Ho // Hb

    # Rough VMEM footprint (tile-padded, double-buffered); raise the scoped limit only
    # when needed.  Cap at 64 MiB (v7x physical VMEM per TensorCore).
    in_tile = (int(np.prod(x_in.shape[1:-2])) * _round_up(x_in.shape[-2], 8)
               * _round_up(x_in.shape[-1], 128) * itemsize)
    out_tile = _round_up(Cout, 8) * _round_up(Hb * Wo, 128) * itemsize
    w_tile = (_round_up(Cout, 8) * _round_up(K * K * Cin, 128)
              * np.dtype(w_mat.dtype).itemsize)
    est = 2 * (in_tile + out_tile) + 2 * w_tile
    vmem_limit = None
    if est > 12 * 1024 * 1024:
        vmem_limit = int(min(max(2 * est, 32 * 1024 * 1024), 64 * 1024 * 1024))

    kernel = functools.partial(_conv_kernel, K=K, stride=s, Hb=Hb, Wo=Wo)

    out = pl.pallas_call(
        kernel,
        out_shape=jax.ShapeDtypeStruct((N, Cout, Ho * Wo), x.dtype),
        grid=(N, n_hblk),
        in_specs=[
            pl.BlockSpec(in_block, in_map),                       # one image per n (resident across rb)
            pl.BlockSpec((Cout, K * K * Cin), lambda n, rb: (0, 0)),  # weights resident
        ],
        out_specs=pl.BlockSpec((None, Cout, Hb * Wo), lambda n, rb: (n, 0, rb)),
        compiler_params=pltpu.CompilerParams(
            dimension_semantics=("parallel", "parallel"),
            vmem_limit_bytes=vmem_limit,
        ),
    )(x_in, w_mat)

    # (N, Cout, Ho*Wo) -> NCHW is a pure reshape (no transpose / extra HBM pass).
    return out.reshape(N, Cout, Ho, Wo)


class C:
    """Pallas port of lanenet.model.blocks.C (Conv2d, bias=False)."""

    def __init__(self, nIn, nOut, kSize, stride=1, *, key=None, dtype=jnp.float32):
        self.nIn, self.nOut, self.kSize, self.stride = nIn, nOut, kSize, stride
        if key is None:
            key = jax.random.PRNGKey(0)
        fan_in = nIn * kSize * kSize
        bound = 1.0 / float(np.sqrt(fan_in))
        # Same init family as PyTorch's default (uniform in [-1/sqrt(fan_in), 1/sqrt(fan_in)]).
        self.weight = jax.random.uniform(
            key, (nOut, nIn, kSize, kSize), dtype, minval=-bound, maxval=bound)

    def __call__(self, x: jnp.ndarray) -> jnp.ndarray:
        return conv2d_same(x, self.weight, stride=self.stride)


def _ref_conv(x, w, *, stride):
    """Pure-JAX reference (matches torch.nn.Conv2d(..., padding=(k-1)//2, bias=False))."""
    K = w.shape[-1]
    p = (K - 1) // 2
    return jax.lax.conv_general_dilated(
        x, w,
        window_strides=(stride, stride),
        padding=[(p, p), (p, p)],
        dimension_numbers=("NCHW", "OIHW", "NCHW"),
    )


if __name__ == "__main__":
    key = jax.random.PRNGKey(0)
    k_x, k_w1, k_w2 = jax.random.split(key, 3)

    # Small deterministic input: batch=2, channels=4, spatial=16x16.
    x = jax.random.normal(k_x, (2, 4, 16, 16), dtype=jnp.float32)

    # Case 1: C(4, 8, kSize=3, stride=1)  (the common lanenet config).
    m1 = C(4, 8, 3, stride=1, key=k_w1)
    y1 = jax.block_until_ready(m1(x))
    ref1 = _ref_conv(x, m1.weight, stride=1)
    assert y1.shape == (2, 8, 16, 16), y1.shape
    np.testing.assert_allclose(np.asarray(y1), np.asarray(ref1), rtol=1e-5, atol=1e-4)

    # Case 2: C(4, 8, kSize=5, stride=2)  (down-sampling path, larger kernel).
    m2 = C(4, 8, 5, stride=2, key=k_w2)
    y2 = jax.block_until_ready(m2(x))
    ref2 = _ref_conv(x, m2.weight, stride=2)
    assert y2.shape == (2, 8, 8, 8), y2.shape
    np.testing.assert_allclose(np.asarray(y2), np.asarray(ref2), rtol=1e-5, atol=1e-4)

    print("KERNEL_OK")
</pallas_src>

<mosaic_0001>
module attributes {stable_mosaic.version = 11 : i64} {
  func.func @_conv_kernel(%arg0: i32, %arg1: i32, %arg2: memref<1x4x18x18xf32, #tpu.memory_space<vmem>>, %arg3: memref<8x36xf32, #tpu.memory_space<vmem>>, %arg4: memref<1x8x128xf32, #tpu.memory_space<vmem>>) attributes {dimension_semantics = [#tpu.dimension_semantics<parallel>, #tpu.dimension_semantics<parallel>], iteration_bounds = array<i64: 2, 2>, scalar_prefetch = 0 : i64, scratch_operands = 0 : i64, tpu.core_type = #tpu.core_type<tc>, window_params = [{transform_indices = @transform_0, window_bounds = array<i64: 1, 4, 18, 18>}, {pipeline_mode = #tpu.pipeline_mode<synchronous>, transform_indices = @transform_1, window_bounds = array<i64: 8, 36>}, {transform_indices = @transform_2, window_bounds = array<i64: 1, 8, 128>}]} {
    %c8_i32 = arith.constant 8 : i32
    %0 = arith.muli %arg1, %c8_i32 : i32
    %1 = tpu.assume_multiple %0, 8 : i32
    %c0_i32 = arith.constant 0 : i32
    %2 = arith.addi %1, %c0_i32 : i32
    %c0 = arith.constant 0 : index
    %c0_0 = arith.constant 0 : index
    %3 = arith.index_cast %2 : i32 to index
    %c0_1 = arith.constant 0 : index
    %4 = vector.load %arg2[%c0, %c0_0, %3, %c0_1] : memref<1x4x18x18xf32, #tpu.memory_space<vmem>>, vector<1x4x8x16xf32>
    %5 = vector.shape_cast %4 : vector<1x4x8x16xf32> to vector<4x8x16xf32>
    %6 = vector.shape_cast %5 : vector<4x8x16xf32> to vector<4x128xf32>
    %c0_i32_2 = arith.constant 0 : i32
    %7 = arith.addi %1, %c0_i32_2 : i32
    %c0_3 = arith.constant 0 : index
    %c0_4 = arith.constant 0 : index
    %8 = arith.index_cast %7 : i32 to index
    %c1 = arith.constant 1 : index
    %9 = vector.load %arg2[%c0_3, %c0_4, %8, %c1] : memref<1x4x18x18xf32, #tpu.memory_space<vmem>>, vector<1x4x8x16xf32>
    %10 = vector.shape_cast %9 : vector<1x4x8x16xf32> to vector<4x8x16xf32>
    %11 = vector.shape_cast %10 : vector<4x8x16xf32> to vector<4x128xf32>
    %c0_i32_5 = arith.constant 0 : i32
    %12 = arith.addi %1, %c0_i32_5 : i32
    %c0_6 = arith.constant 0 : index
    %c0_7 = arith.constant 0 : index
    %13 = arith.index_cast %12 : i32 to index
    %c2 = arith.constant 2 : index
    %14 = vector.load %arg2[%c0_6, %c0_7, %13, %c2] : memref<1x4x18x18xf32, #tpu.memory_space<vmem>>, vector<1x4x8x16xf32>
    %15 = vector.shape_cast %14 : vector<1x4x8x16xf32> to vector<4x8x16xf32>
    %16 = vector.shape_cast %15 : vector<4x8x16xf32> to vector<4x128xf32>
    %c1_i32 = arith.constant 1 : i32
    %17 = arith.addi %1, %c1_i32 : i32
    %c0_8 = arith.constant 0 : index
    %c0_9 = arith.constant 0 : index
    %18 = arith.index_cast %17 : i32 to index
    %c0_10 = arith.constant 0 : index
    %19 = vector.load %arg2[%c0_8, %c0_9, %18, %c0_10] : memref<1x4x18x18xf32, #tpu.memory_space<vmem>>, vector<1x4x8x16xf32>
    %20 = vector.shape_cast %19 : vector<1x4x8x16xf32> to vector<4x8x16xf32>
    %21 = vector.shape_cast %20 : vector<4x8x16xf32> to vector<4x128xf32>
    %c1_i32_11 = arith.constant 1 : i32
    %22 = arith.addi %1, %c1_i32_11 : i32
    %c0_12 = arith.constant 0 : index
    %c0_13 = arith.constant 0 : index
    %23 = arith.index_cast %22 : i32 to index
    %c1_14 = arith.constant 1 : index
    %24 = vector.load %arg2[%c0_12, %c0_13, %23, %c1_14] : memref<1x4x18x18xf32, #tpu.memory_space<vmem>>, vector<1x4x8x16xf32>
    %25 = vector.shape_cast %24 : vector<1x4x8x16xf32> to vector<4x8x16xf32>
    %26 = vector.shape_cast %25 : vector<4x8x16xf32> to vector<4x128xf32>
    %c1_i32_15 = arith.constant 1 : i32
    %27 = arith.addi %1, %c1_i32_15 : i32
    %c0_16 = arith.constant 0 : index
    %c0_17 = arith.constant 0 : index
    %28 = arith.index_cast %27 : i32 to index
    %c2_18 = arith.constant 2 : index
    %29 = vector.load %arg2[%c0_16, %c0_17, %28, %c2_18] : memref<1x4x18x18xf32, #tpu.memory_space<vmem>>, vector<1x4x8x16xf32>
    %30 = vector.shape_cast %29 : vector<1x4x8x16xf32> to vector<4x8x16xf32>
    %31 = vector.shape_cast %30 : vector<4x8x16xf32> to vector<4x128xf32>
    %c2_i32 = arith.constant 2 : i32
    %32 = arith.addi %1, %c2_i32 : i32
    %c0_19 = arith.constant 0 : index
    %c0_20 = arith.constant 0 : index
    %33 = arith.index_cast %32 : i32 to index
    %c0_21 = arith.constant 0 : index
    %34 = vector.load %arg2[%c0_19, %c0_20, %33, %c0_21] : memref<1x4x18x18xf32, #tpu.memory_space<vmem>>, vector<1x4x8x16xf32>
    %35 = vector.shape_cast %34 : vector<1x4x8x16xf32> to vector<4x8x16xf32>
    %36 = vector.shape_cast %35 : vector<4x8x16xf32> to vector<4x128xf32>
    %c2_i32_22 = arith.constant 2 : i32
    %37 = arith.addi %1, %c2_i32_22 : i32
    %c0_23 = arith.constant 0 : index
    %c0_24 = arith.constant 0 : index
    %38 = arith.index_cast %37 : i32 to index
    %c1_25 = arith.constant 1 : index
    %39 = vector.load %arg2[%c0_23, %c0_24, %38, %c1_25] : memref<1x4x18x18xf32, #tpu.memory_space<vmem>>, vector<1x4x8x16xf32>
    %40 = vector.shape_cast %39 : vector<1x4x8x16xf32> to vector<4x8x16xf32>
    %41 = vector.shape_cast %40 : vector<4x8x16xf32> to vector<4x128xf32>
    %c2_i32_26 = arith.constant 2 : i32
    %42 = arith.addi %1, %c2_i32_26 : i32
    %c0_27 = arith.constant 0 : index
    %c0_28 = arith.constant 0 : index
    %43 = arith.index_cast %42 : i32 to index
    %c2_29 = arith.constant 2 : index
    %44 = vector.load %arg2[%c0_27, %c0_28, %43, %c2_29] : memref<1x4x18x18xf32, #tpu.memory_space<vmem>>, vector<1x4x8x16xf32>
    %45 = vector.shape_cast %44 : vector<1x4x8x16xf32> to vector<4x8x16xf32>
    %46 = vector.shape_cast %45 : vector<4x8x16xf32> to vector<4x128xf32>
    %47 = tpu.concatenate %6, %11, %16, %21, %26, %31, %36, %41, %46 in 0 : vector<4x128xf32>, vector<4x128xf32>, vector<4x128xf32>, vector<4x128xf32>, vector<4x128xf32>, vector<4x128xf32>, vector<4x128xf32>, vector<4x128xf32>, vector<4x128xf32> -> vector<36x128xf32>
    %c0_30 = arith.constant 0 : index
    %c0_31 = arith.constant 0 : index
    %48 = vector.load %arg3[%c0_30, %c0_31] : memref<8x36xf32, #tpu.memory_space<vmem>>, vector<8x36xf32>
    %cst = arith.constant dense<0.000000e+00> : vector<8x128xf32>
    %49 = tpu.matmul %48, %47, %cst {dimension_numbers = #tpu.dot_dimension_numbers<[1], [0], [0], [1], [0, 0, 1, 1], [], []>} : vector<8x36xf32>, vector<36x128xf32>, vector<8x128xf32> -> vector<8x128xf32>
    %c0_32 = arith.constant 0 : index
    %c0_33 = arith.constant 0 : index
    %c0_34 = arith.constant 0 : index
    %50 = vector.load %arg4[%c0_32, %c0_33, %c0_34] : memref<1x8x128xf32, #tpu.memory_space<vmem>>, vector<1x8x128xf32>
    %51 = vector.shape_cast %50 : vector<1x8x128xf32> to vector<8x128xf32>
    %52 = vector.shape_cast %49 : vector<8x128xf32> to vector<1x8x128xf32>
    tpu.vector_store %arg4[%c0_32, %c0_33, %c0_34], %52 {strides = array<i32>} : memref<1x8x128xf32, #tpu.memory_space<vmem>>, vector<1x8x128xf32>,
    return
  }
  func.func @transform_0(%arg0: i32, %arg1: i32) -> (i32, i32, i32, i32) {
    %c0_i32 = arith.constant 0 : i32
    %c0_i32_0 = arith.constant 0 : i32
    %c0_i32_1 = arith.constant 0 : i32
    %c0_i32_2 = arith.constant 0 : i32
    return %arg0, %c0_i32, %c0_i32_0, %c0_i32_1 : i32, i32, i32, i32
  }
  func.func @transform_1(%arg0: i32, %arg1: i32) -> (i32, i32) {
    %c0_i32 = arith.constant 0 : i32
    %c0_i32_0 = arith.constant 0 : i32
    %c0_i32_1 = arith.constant 0 : i32
    return %c0_i32, %c0_i32_0 : i32, i32
  }
  func.func @transform_2(%arg0: i32, %arg1: i32) -> (i32, i32, i32) {
    %c0_i32 = arith.constant 0 : i32
    %c0_i32_0 = arith.constant 0 : i32
    return %arg0, %c0_i32, %arg1 : i32, i32, i32
  }
}

</mosaic_0001>

<llo_original>
// kernel: tpu_custom_call.1
$region0: #{tpu_custom_call.1}
  #allocation0 [shape = 'u32[]', space=smem, size = 0x4, offset = 0x4, fixed_abs, tag = 'smem constant byte address 0x4 - core index']
  #allocation1 [shape = 'u32[144,128]{1,0:T(1,128)}', space=vmem, size = 0x12000, scoped, tag = 'internal scratch']
  %s0 = inlined_call_operand.vmem [shape: f32[2,4,18,18], index: 0, kind: input, shape index: {}]
  %s1 = inlined_call_operand.vmem [shape: f32[8,36], index: 1, kind: input, shape index: {}]
  %s2 = inlined_call_operand.hbm [shape: f32[2,8,256], index: 2, kind: output, shape index: {}]
  %s3 = sld [smem:[#allocation0]]
  $region41: #{tpu_custom_call.1} parent=0
    _
  %s5 = ssub.s32 1, %s3
  %s6 = scalar_select 0, %s5, %s3
  $region1: #{tpu_custom_call.1} parent=0
    #allocation2 [shape = 'u8[8192]{0}', space=vmem, size = 0x2000, scoped, tag = 'output window, operand 0']
    #allocation3 [shape = 's32[2]{0}', space=sflag, size = 0x8, scoped, tag = 'scoped memory for tpu_custom_call.1']
    %7 = vsyncpa [#allocation3], 0
    %s8 = scalar_lea.sflag [#allocation3], 1
    %9 = vsyncpa %s8, 0
    loop: start=0, step=1, limit=6
    $region2: #{tpu_custom_call.1} parent=1 // loop_pre_header
      _
    $region3: #{tpu_custom_call.1} parent=1 // loop_header
      %s11 = sphi 0, %s15
      %p12 = scmp.ge.s32.totalorder %s11, 6
      %s18 = sphi 0, %s30
      %s19 = sphi 0, %s26
      %s20 = sphi 0, %s18
      %s21 = sphi 0, %s19
      %s22 = sphi 0, %s20
      %s23 = sphi 0, %s21
      %s33 = sphi 0, %s35
      %s36 = sphi 0, %s33
      %s37 = sphi 0, %s36
      %s53 = sphi 0, %s37
      %s57 = sphi 0, %s57
      %s59 = sphi 0, %s57
      %s60 = sphi 0, %s59
      %s74 = sphi 0, %s60
      %s82 = sphi 0, %s84
      %s85 = sphi 0, %s82
      %s86 = sphi 0, %s85
      %s102 = sphi 0, %s86
    $region4: #{tpu_custom_call.1} parent=1 // loop_header_branch
      %14 = sbr.rel (%p12) target = $region8
    $region5: #{tpu_custom_call.1} parent=1 // loop_body
      %s16 = ssub.s32 %s11, 1
      %s17 = ssub.s32 %s11, 2
      %s24 = sadd.s32 1, %s19
      %p25 = scmp.ge.s32.totalorder %s24, 2
      %s26 = scalar_select %p25, 0, %s24
      %s27 = sadd.s32 1, %s18
      %s28 = scalar_select %p25, %s27, %s18
      %p29 = scmp.ge.s32.totalorder %s28, 2
      %s30 = scalar_select %p29, 0, %s28
      %s31 = ssub.s32 %s18, %s30
      %p32 = scmp.eq.s32.totalorder %s31, 0
      %s34 = sadd.s32 %s33, 1
      %s35 = scalar_select %p32, %s33, %s34
      %p38 = pneg %p32
      %p39 = scmp.eq.s32.totalorder %s11, 3
      %p40 = por %p38, %p39
      %p41 = scmp.ne.s32.totalorder %s33, %s36
      %p42 = scmp.eq.s32.totalorder %s11, 0
      %p43 = por %p41, %p42
      %p44 = scmp.ne.s32.totalorder %s33, %s36
      %p45 = scmp.eq.s32.totalorder %s16, 3
      %p46 = por %p44, %p45
      %p47 = scmp.ne.s32.totalorder %s36, %s37
      %p48 = scmp.eq.s32.totalorder %s16, 0
      %p49 = por %p47, %p48
      %p50 = scmp.ne.s32.totalorder %s36, %s37
      %p51 = scmp.eq.s32.totalorder %s17, 3
      %p52 = por %p50, %p51
      %p54 = scmp.ne.s32.totalorder %s37, %s53
      %p55 = scmp.eq.s32.totalorder %s17, 0
      %p56 = por %p54, %p55
      %s58 = sadd.s32 %s57, 1
      %p61 = scmp.eq.s32.totalorder %s11, 3
      %p62 = scmp.ne.s32.totalorder %s57, %s59
      %p63 = scmp.eq.s32.totalorder %s11, 0
      %p64 = por %p62, %p63
      %p65 = scmp.ne.s32.totalorder %s57, %s59
      %p66 = scmp.eq.s32.totalorder %s16, 3
      %p67 = por %p65, %p66
      %p68 = scmp.ne.s32.totalorder %s59, %s60
      %p69 = scmp.eq.s32.totalorder %s16, 0
      %p70 = por %p68, %p69
      %p71 = scmp.ne.s32.totalorder %s59, %s60
      %p72 = scmp.eq.s32.totalorder %s17, 3
      %p73 = por %p71, %p72
      %p75 = scmp.ne.s32.totalorder %s60, %s74
      %p76 = scmp.eq.s32.totalorder %s17, 0
      %p77 = por %p75, %p76
      %s78 = ssub.s32 %s18, %s30
      %s79 = ssub.s32 %s19, %s26
      %s80 = sor.u32 %s78, %s79
      %p81 = scmp.eq.s32.totalorder %s80, 0
      %s83 = sadd.s32 %s82, 1
      %s84 = scalar_select %p81, %s82, %s83
      %p87 = pneg %p81
      %p88 = scmp.eq.s32.totalorder %s11, 3
      %p89 = por %p87, %p88
      %p90 = scmp.ne.s32.totalorder %s82, %s85
      %p91 = scmp.eq.s32.totalorder %s11, 0
      %p92 = por %p90, %p91
      %p93 = scmp.ne.s32.totalorder %s82, %s85
      %p94 = scmp.eq.s32.totalorder %s16, 3
      %p95 = por %p93, %p94
      %p96 = scmp.ne.s32.totalorder %s85, %s86
      %p97 = scmp.eq.s32.totalorder %s16, 0
      %p98 = por %p96, %p97
      %p99 = scmp.ne.s32.totalorder %s85, %s86
      %p100 = scmp.eq.s32.totalorder %s17, 3
      %p101 = por %p99, %p100
      %p103 = scmp.ne.s32.totalorder %s86, %s102
      %p104 = scmp.eq.s32.totalorder %s17, 0
      %p105 = por %p103, %p104
      %p106 = scmp.le.s32.totalorder 1, %s11
      %p107 = scmp.lt.s32.totalorder %s11, 5
      %p108 = pnand %p106, %p107
      %p109 = pneg %p108
      // Predicated region
      $region9: #{tpu_custom_call.1} parent=5 // pred_check
        _
      $region10: #{tpu_custom_call.1} parent=5 // pred_check_branch
        %111 = sbr.rel (%p108) target = $region12
      $region11: #{tpu_custom_call.1} parent=5 // pred_region
        %s112 = ssub.s32 %s11, 1
        // Predicated region
        $region13: #{tpu_custom_call.1} parent=11 // pred_check
          %p113 = pneg %p70
        $region14: #{tpu_custom_call.1} parent=11 // pred_check_branch
          %115 = sbr.rel (%p113) target = $region16
        $region15: #{tpu_custom_call.1} parent=11 // pred_region
          _
        $region16: #{tpu_custom_call.1} parent=11 // pred_fallthru
          _
      $region12: #{tpu_custom_call.1} parent=5 // pred_fallthru
        _
      %p116 = scmp.lt.s32.totalorder %s11, 4
      // Predicated region
      $region17: #{tpu_custom_call.1} parent=5 // pred_check
        %p117 = pneg %p116
      $region18: #{tpu_custom_call.1} parent=5 // pred_check_branch
        %119 = sbr.rel (%p117) target = $region20
      $region19: #{tpu_custom_call.1} parent=5 // pred_region
        // Predicated region
        $region21: #{tpu_custom_call.1} parent=19 // pred_check
          %p120 = pneg %p43
        $region22: #{tpu_custom_call.1} parent=19 // pred_check_branch
          %122 = sbr.rel (%p120) target = $region24
        $region23: #{tpu_custom_call.1} parent=19 // pred_region
          %p123 = scmp.lt.s32.totalorder %s18, 1
          %s124 = scalar_select %p123, %s18, 1
          %s125 = smul.addr %s124, 12
          %s126 = smul.addr %s125, 8
          %s127 = scalar_lea.vmem %s0, %s126
        $region24: #{tpu_custom_call.1} parent=19 // pred_fallthru
          _
      $region20: #{tpu_custom_call.1} parent=5 // pred_fallthru
        _
      %p128 = scmp.le.s32.totalorder 1, %s11
      %p129 = scmp.lt.s32.totalorder %s11, 5
      %p130 = pnand %p128, %p129
      %p131 = pneg %p130
      // Predicated region
      $region25: #{tpu_custom_call.1} parent=5 // pred_check
        _
      $region26: #{tpu_custom_call.1} parent=5 // pred_check_branch
        %133 = sbr.rel (%p130) target = $region28
      $region27: #{tpu_custom_call.1} parent=5 // pred_region
        %s134 = ssub.s32 %s11, 1
        %p135 = scmp.lt.s32.totalorder %s20, 1
        %s136 = scalar_select %p135, %s20, 1
        %s137 = smul.addr %s136, 12
        %s138 = smul.addr %s137, 8
        %s139 = scalar_lea.vmem %s0, %s138
        %p140 = pneg %p49
        %p141 = pneg %p46
        %p142 = pneg %p70
        %p143 = pneg %p67
        %p144 = pneg %p98
        %p145 = pneg %p95
        %s146 = sand.u32 %s85, 1
        %s147 = scalar_lea.sflag [#allocation3], %s146
        %s148 = sand.u32 %s85, 1
        %s149 = smul.addr %s148, 8
        %s150 = scalar_lea.vmem [#allocation2], %s149
        %p151 = scmp.lt.s32.totalorder %s20, 1
        %s152 = scalar_select %p151, %s20, 1
        %s153 = smul.addr %s152, 12
        %s154 = smul.addr %s153, 8
        %s155 = scalar_lea.vmem %s0, %s154
        %s156 = smul.u32 %s21, 8
        %s157 = scalar_lea.vmem %s155, %s156
        %v158 = vld [vmem:[%s157] sm:$0xff]
        %v159 = vld [vmem:[%s157 + $0x18] sm:$0xff]
        %v160 = vld [vmem:[%s157 + $0x30] sm:$0xff]
        %v161 = vld [vmem:[%s157 + $0x48] sm:$0xff]
        %v162 = vcombine.low %v158, %v160
        %v163 = vcombine.high %v158, %v160
        %v165 = vunpack.c.l.s4 1983009808
        %v166 = vunpack.c.0.s8 %v165
        %v167 = vlaneseq
        %v168 = vshrl.u32 %v167, 7
        %v169 = vsub.s32 %v166, %v168
        %v170 = vrot.slane %v162, %v169
        %v172 = vunpack.c.l.s4 1983009808
        %v173 = vunpack.c.0.s8 %v172
        %v174 = vlaneseq
        %v175 = vshrl.u32 %v174, 7
        %v176 = vsub.s32 %v173, %v175
        %v177 = vrot.slane %v163, %v176
        %v178 = vcombine.low %v159, %v161
        %v179 = vcombine.high %v159, %v161
        %v181 = vunpack.c.l.s4 1983009808
        %v182 = vunpack.c.0.s8 %v181
        %v183 = vlaneseq
        %v184 = vshrl.u32 %v183, 7
        %v185 = vsub.s32 %v182, %v184
        %v186 = vrot.slane %v178, %v185
        %v188 = vunpack.c.l.s4 1983009808
        %v189 = vunpack.c.0.s8 %v188
        %v190 = vlaneseq
        %v191 = vshrl.u32 %v190, 7
        %v192 = vsub.s32 %v189, %v191
        %v193 = vrot.slane %v179, %v192
        %v194 = vcombine.low %v170, %v186
        %v195 = vcombine.high %v170, %v186
        %v197 = vunpack.c.l.s4 1934713408
        %v198 = vunpack.c.0.s8 %v197
        %v199 = vlaneseq
        %v200 = vshrl.u32 %v199, 7
        %v201 = vsub.s32 %v198, %v200
        %v202 = vrot.slane %v194, %v201
        %v204 = vunpack.c.l.s4 1934713408
        %v205 = vunpack.c.0.s8 %v204
        %v206 = vlaneseq
        %v207 = vshrl.u32 %v206, 7
        %v208 = vsub.s32 %v205, %v207
        %v209 = vrot.slane %v195, %v208
        %v210 = vcombine.low %v177, %v193
        %v211 = vcombine.high %v177, %v193
        %v213 = vunpack.c.l.s4 1934713408
        %v214 = vunpack.c.0.s8 %v213
        %v215 = vlaneseq
        %v216 = vshrl.u32 %v215, 7
        %v217 = vsub.s32 %v214, %v216
        %v218 = vrot.slane %v210, %v217
        %v220 = vunpack.c.l.s4 1934713408
        %v221 = vunpack.c.0.s8 %v220
        %v222 = vlaneseq
        %v223 = vshrl.u32 %v222, 7
        %v224 = vsub.s32 %v221, %v223
        %v225 = vrot.slane %v211, %v224
        %v226 = vcombine.high %v202, 0.0
        %v227 = vcombine.high %v209, 0.0
        %v228 = vcombine.high %v218, 0.0
        %v229 = vcombine.high %v225, 0.0
        %231 = vrot.lane.b32.xlu0 %v226, 16
        %v232 = vpop.permute.xlu0 %231
        %235 = vrot.lane.b32.xlu0 %v209, 32
        %v236 = vpop.permute.xlu0 %235
        %239 = vrot.lane.b32.xlu0 %v227, 48
        %v240 = vpop.permute.xlu0 %239
        %243 = vrot.lane.b32.xlu0 %v218, 64
        %v244 = vpop.permute.xlu0 %243
        %247 = vrot.lane.b32.xlu0 %v228, 80
        %v248 = vpop.permute.xlu0 %247
        %251 = vrot.lane.b32.xlu0 %v225, 96
        %v252 = vpop.permute.xlu0 %251
        %255 = vrot.lane.b32.xlu0 %v229, 112
        %v256 = vpop.permute.xlu0 %255
        %vm258 = vcmask 130048
        %v259 = vsel %vm258, %v202, %v232
        %vm260 = vcmask 261120
        %v261 = vsel %vm260, %v259, %v236
        %vm262 = vcmask 392192
        %v263 = vsel %vm262, %v261, %v240
        %vm264 = vcmask 523264
        %v265 = vsel %vm264, %v263, %v244
        %vm266 = vcmask 654336
        %v267 = vsel %vm266, %v265, %v248
        %vm268 = vcmask 785408
        %v269 = vsel %vm268, %v267, %v252
        %vm270 = vcmask 916480
        %v271 = vsel %vm270, %v269, %v256
        %276 = vrot.lane.b32.xlu0 %v158, 127
        %v277 = vpop.permute.xlu0 %276
        %278 = vrot.lane.b32.xlu0 %v159, 127
        %v279 = vpop.permute.xlu0 %278
        %280 = vrot.lane.b32.xlu0 %v160, 127
        %v281 = vpop.permute.xlu0 %280
        %282 = vrot.lane.b32.xlu0 %v161, 127
        %v283 = vpop.permute.xlu0 %282
        %v288 = vcombine.low %v277, %v281
        %v289 = vcombine.high %v277, %v281
        %v291 = vunpack.c.l.s4 1983009808
        %v292 = vunpack.c.0.s8 %v291
        %v293 = vlaneseq
        %v294 = vshrl.u32 %v293, 7
        %v295 = vsub.s32 %v292, %v294
        %v296 = vrot.slane %v288, %v295
        %v298 = vunpack.c.l.s4 1983009808
        %v299 = vunpack.c.0.s8 %v298
        %v300 = vlaneseq
        %v301 = vshrl.u32 %v300, 7
        %v302 = vsub.s32 %v299, %v301
        %v303 = vrot.slane %v289, %v302
        %v304 = vcombine.low %v279, %v283
        %v305 = vcombine.high %v279, %v283
        %v307 = vunpack.c.l.s4 1983009808
        %v308 = vunpack.c.0.s8 %v307
        %v309 = vlaneseq
        %v310 = vshrl.u32 %v309, 7
        %v311 = vsub.s32 %v308, %v310
        %v312 = vrot.slane %v304, %v311
        %v314 = vunpack.c.l.s4 1983009808
        %v315 = vunpack.c.0.s8 %v314
        %v316 = vlaneseq
        %v317 = vshrl.u32 %v316, 7
        %v318 = vsub.s32 %v315, %v317
        %v319 = vrot.slane %v305, %v318
        %v320 = vcombine.low %v296, %v312
        %v321 = vcombine.high %v296, %v312
        %v323 = vunpack.c.l.s4 1934713408
        %v324 = vunpack.c.0.s8 %v323
        %v325 = vlaneseq
        %v326 = vshrl.u32 %v325, 7
        %v327 = vsub.s32 %v324, %v326
        %v328 = vrot.slane %v320, %v327
        %v330 = vunpack.c.l.s4 1934713408
        %v331 = vunpack.c.0.s8 %v330
        %v332 = vlaneseq
        %v333 = vshrl.u32 %v332, 7
        %v334 = vsub.s32 %v331, %v333
        %v335 = vrot.slane %v321, %v334
        %v336 = vcombine.low %v303, %v319
        %v337 = vcombine.high %v303, %v319
        %v339 = vunpack.c.l.s4 1934713408
        %v340 = vunpack.c.0.s8 %v339
        %v341 = vlaneseq
        %v342 = vshrl.u32 %v341, 7
        %v343 = vsub.s32 %v340, %v342
        %v344 = vrot.slane %v336, %v343
        %v346 = vunpack.c.l.s4 1934713408
        %v347 = vunpack.c.0.s8 %v346
        %v348 = vlaneseq
        %v349 = vshrl.u32 %v348, 7
        %v350 = vsub.s32 %v347, %v349
        %v351 = vrot.slane %v337, %v350
        %v352 = vcombine.high %v328, 0.0
        %v353 = vcombine.high %v335, 0.0
        %v354 = vcombine.high %v344, 0.0
        %v355 = vcombine.high %v351, 0.0
        %357 = vrot.lane.b32.xlu0 %v352, 16
        %v358 = vpop.permute.xlu0 %357
        %361 = vrot.lane.b32.xlu0 %v335, 32
        %v362 = vpop.permute.xlu0 %361
        %365 = vrot.lane.b32.xlu0 %v353, 48
        %v366 = vpop.permute.xlu0 %365
        %369 = vrot.lane.b32.xlu0 %v344, 64
        %v370 = vpop.permute.xlu0 %369
        %373 = vrot.lane.b32.xlu0 %v354, 80
        %v374 = vpop.permute.xlu0 %373
        %377 = vrot.lane.b32.xlu0 %v351, 96
        %v378 = vpop.permute.xlu0 %377
        %381 = vrot.lane.b32.xlu0 %v355, 112
        %v382 = vpop.permute.xlu0 %381
        %v384 = vsel %vm258, %v328, %v358
        %v385 = vsel %vm260, %v384, %v362
        %v386 = vsel %vm262, %v385, %v366
        %v387 = vsel %vm264, %v386, %v370
        %v388 = vsel %vm266, %v387, %v374
        %v389 = vsel %vm268, %v388, %v378
        %v390 = vsel %vm270, %v389, %v382
        %391 = vrot.lane.b32.xlu0 %v158, 126
        %v392 = vpop.permute.xlu0 %391
        %393 = vrot.lane.b32.xlu0 %v159, 126
        %v394 = vpop.permute.xlu0 %393
        %395 = vrot.lane.b32.xlu0 %v160, 126
        %v396 = vpop.permute.xlu0 %395
        %397 = vrot.lane.b32.xlu0 %v161, 126
        %v398 = vpop.permute.xlu0 %397
        %v403 = vcombine.low %v392, %v396
        %v404 = vcombine.high %v392, %v396
        %v406 = vunpack.c.l.s4 1983009808
        %v407 = vunpack.c.0.s8 %v406
        %v408 = vlaneseq
        %v409 = vshrl.u32 %v408, 7
        %v410 = vsub.s32 %v407, %v409
        %v411 = vrot.slane %v403, %v410
        %v413 = vunpack.c.l.s4 1983009808
        %v414 = vunpack.c.0.s8 %v413
        %v415 = vlaneseq
        %v416 = vshrl.u32 %v415, 7
        %v417 = vsub.s32 %v414, %v416
        %v418 = vrot.slane %v404, %v417
        %v419 = vcombine.low %v394, %v398
        %v420 = vcombine.high %v394, %v398
        %v422 = vunpack.c.l.s4 1983009808
        %v423 = vunpack.c.0.s8 %v422
        %v424 = vlaneseq
        %v425 = vshrl.u32 %v424, 7
        %v426 = vsub.s32 %v423, %v425
        %v427 = vrot.slane %v419, %v426
        %v429 = vunpack.c.l.s4 1983009808
        %v430 = vunpack.c.0.s8 %v429
        %v431 = vlaneseq
        %v432 = vshrl.u32 %v431, 7
        %v433 = vsub.s32 %v430, %v432
        %v434 = vrot.slane %v420, %v433
        %v435 = vcombine.low %v411, %v427
        %v436 = vcombine.high %v411, %v427
        %v438 = vunpack.c.l.s4 1934713408
        %v439 = vunpack.c.0.s8 %v438
        %v440 = vlaneseq
        %v441 = vshrl.u32 %v440, 7
        %v442 = vsub.s32 %v439, %v441
        %v443 = vrot.slane %v435, %v442
        %v445 = vunpack.c.l.s4 1934713408
        %v446 = vunpack.c.0.s8 %v445
        %v447 = vlaneseq
        %v448 = vshrl.u32 %v447, 7
        %v449 = vsub.s32 %v446, %v448
        %v450 = vrot.slane %v436, %v449
        %v451 = vcombine.low %v418, %v434
        %v452 = vcombine.high %v418, %v434
        %v454 = vunpack.c.l.s4 1934713408
        %v455 = vunpack.c.0.s8 %v454
        %v456 = vlaneseq
        %v457 = vshrl.u32 %v456, 7
        %v458 = vsub.s32 %v455, %v457
        %v459 = vrot.slane %v451, %v458
        %v461 = vunpack.c.l.s4 1934713408
        %v462 = vunpack.c.0.s8 %v461
        %v463 = vlaneseq
        %v464 = vshrl.u32 %v463, 7
        %v465 = vsub.s32 %v462, %v464
        %v466 = vrot.slane %v452, %v465
        %v467 = vcombine.high %v443, 0.0
        %v468 = vcombine.high %v450, 0.0
        %v469 = vcombine.high %v459, 0.0
        %v470 = vcombine.high %v466, 0.0
        %472 = vrot.lane.b32.xlu0 %v467, 16
        %v473 = vpop.permute.xlu0 %472
        %476 = vrot.lane.b32.xlu0 %v450, 32
        %v477 = vpop.permute.xlu0 %476
        %480 = vrot.lane.b32.xlu0 %v468, 48
        %v481 = vpop.permute.xlu0 %480
        %484 = vrot.lane.b32.xlu0 %v459, 64
        %v485 = vpop.permute.xlu0 %484
        %488 = vrot.lane.b32.xlu0 %v469, 80
        %v489 = vpop.permute.xlu0 %488
        %492 = vrot.lane.b32.xlu0 %v466, 96
        %v493 = vpop.permute.xlu0 %492
        %496 = vrot.lane.b32.xlu0 %v470, 112
        %v497 = vpop.permute.xlu0 %496
        %v499 = vsel %vm258, %v443, %v473
        %v500 = vsel %vm260, %v499, %v477
        %v501 = vsel %vm262, %v500, %v481
        %v502 = vsel %vm264, %v501, %v485
        %v503 = vsel %vm266, %v502, %v489
        %v504 = vsel %vm268, %v503, %v493
        %v505 = vsel %vm270, %v504, %v497
        %s506 = sadd.s32 %s156, 1
        %s507 = scalar_lea.vmem %s155, %s506
        %v508 = vld [vmem:[%s507] sm:$0xff]
        %v509 = vld [vmem:[%s507 + $0x18] sm:$0xff]
        %v510 = vld [vmem:[%s507 + $0x30] sm:$0xff]
        %v511 = vld [vmem:[%s507 + $0x48] sm:$0xff]
        %v512 = vcombine.low %v508, %v510
        %v513 = vcombine.high %v508, %v510
        %v515 = vunpack.c.l.s4 1983009808
        %v516 = vunpack.c.0.s8 %v515
        %v517 = vlaneseq
        %v518 = vshrl.u32 %v517, 7
        %v519 = vsub.s32 %v516, %v518
        %v520 = vrot.slane %v512, %v519
        %v522 = vunpack.c.l.s4 1983009808
        %v523 = vunpack.c.0.s8 %v522
        %v524 = vlaneseq
        %v525 = vshrl.u32 %v524, 7
        %v526 = vsub.s32 %v523, %v525
        %v527 = vrot.slane %v513, %v526
        %v528 = vcombine.low %v509, %v511
        %v529 = vcombine.high %v509, %v511
        %v531 = vunpack.c.l.s4 1983009808
        %v532 = vunpack.c.0.s8 %v531
        %v533 = vlaneseq
        %v534 = vshrl.u32 %v533, 7
        %v535 = vsub.s32 %v532, %v534
        %v536 = vrot.slane %v528, %v535
        %v538 = vunpack.c.l.s4 1983009808
        %v539 = vunpack.c.0.s8 %v538
        %v540 = vlaneseq
        %v541 = vshrl.u32 %v540, 7
        %v542 = vsub.s32 %v539, %v541
        %v543 = vrot.slane %v529, %v542
        %v544 = vcombine.low %v520, %v536
        %v545 = vcombine.high %v520, %v536
        %v547 = vunpack.c.l.s4 1934713408
        %v548 = vunpack.c.0.s8 %v547
        %v549 = vlaneseq
        %v550 = vshrl.u32 %v549, 7
        %v551 = vsub.s32 %v548, %v550
        %v552 = vrot.slane %v544, %v551
        %v554 = vunpack.c.l.s4 1934713408
        %v555 = vunpack.c.0.s8 %v554
        %v556 = vlaneseq
        %v557 = vshrl.u32 %v556, 7
        %v558 = vsub.s32 %v555, %v557
        %v559 = vrot.slane %v545, %v558
        %v560 = vcombine.low %v527, %v543
        %v561 = vcombine.high %v527, %v543
        %v563 = vunpack.c.l.s4 1934713408
        %v564 = vunpack.c.0.s8 %v563
        %v565 = vlaneseq
        %v566 = vshrl.u32 %v565, 7
        %v567 = vsub.s32 %v564, %v566
        %v568 = vrot.slane %v560, %v567
        %v570 = vunpack.c.l.s4 1934713408
        %v571 = vunpack.c.0.s8 %v570
        %v572 = vlaneseq
        %v573 = vshrl.u32 %v572, 7
        %v574 = vsub.s32 %v571, %v573
        %v575 = vrot.slane %v561, %v574
        %v576 = vcombine.high %v552, 0.0
        %v577 = vcombine.high %v559, 0.0
        %v578 = vcombine.high %v568, 0.0
        %v579 = vcombine.high %v575, 0.0
        %581 = vrot.lane.b32.xlu0 %v576, 16
        %v582 = vpop.permute.xlu0 %581
        %585 = vrot.lane.b32.xlu0 %v559, 32
        %v586 = vpop.permute.xlu0 %585
        %589 = vrot.lane.b32.xlu0 %v577, 48
        %v590 = vpop.permute.xlu0 %589
        %593 = vrot.lane.b32.xlu0 %v568, 64
        %v594 = vpop.permute.xlu0 %593
        %597 = vrot.lane.b32.xlu0 %v578, 80
        %v598 = vpop.permute.xlu0 %597
        %601 = vrot.lane.b32.xlu0 %v575, 96
        %v602 = vpop.permute.xlu0 %601
        %605 = vrot.lane.b32.xlu0 %v579, 112
        %v606 = vpop.permute.xlu0 %605
        %v608 = vsel %vm258, %v552, %v582
        %v609 = vsel %vm260, %v608, %v586
        %v610 = vsel %vm262, %v609, %v590
        %v611 = vsel %vm264, %v610, %v594
        %v612 = vsel %vm266, %v611, %v598
        %v613 = vsel %vm268, %v612, %v602
        %v614 = vsel %vm270, %v613, %v606
        %619 = vrot.lane.b32.xlu0 %v508, 127
        %v620 = vpop.permute.xlu0 %619
        %621 = vrot.lane.b32.xlu0 %v509, 127
        %v622 = vpop.permute.xlu0 %621
        %623 = vrot.lane.b32.xlu0 %v510, 127
        %v624 = vpop.permute.xlu0 %623
        %625 = vrot.lane.b32.xlu0 %v511, 127
        %v626 = vpop.permute.xlu0 %625
        %v631 = vcombine.low %v620, %v624
        %v632 = vcombine.high %v620, %v624
        %v634 = vunpack.c.l.s4 1983009808
        %v635 = vunpack.c.0.s8 %v634
        %v636 = vlaneseq
        %v637 = vshrl.u32 %v636, 7
        %v638 = vsub.s32 %v635, %v637
        %v639 = vrot.slane %v631, %v638
        %v641 = vunpack.c.l.s4 1983009808
        %v642 = vunpack.c.0.s8 %v641
        %v643 = vlaneseq
        %v644 = vshrl.u32 %v643, 7
        %v645 = vsub.s32 %v642, %v644
        %v646 = vrot.slane %v632, %v645
        %v647 = vcombine.low %v622, %v626
        %v648 = vcombine.high %v622, %v626
        %v650 = vunpack.c.l.s4 1983009808
        %v651 = vunpack.c.0.s8 %v650
        %v652 = vlaneseq
        %v653 = vshrl.u32 %v652, 7
        %v654 = vsub.s32 %v651, %v653
        %v655 = vrot.slane %v647, %v654
        %v657 = vunpack.c.l.s4 1983009808
        %v658 = vunpack.c.0.s8 %v657
        %v659 = vlaneseq
        %v660 = vshrl.u32 %v659, 7
        %v661 = vsub.s32 %v658, %v660
        %v662 = vrot.slane %v648, %v661
        %v663 = vcombine.low %v639, %v655
        %v664 = vcombine.high %v639, %v655
        %v666 = vunpack.c.l.s4 1934713408
        %v667 = vunpack.c.0.s8 %v666
        %v668 = vlaneseq
        %v669 = vshrl.u32 %v668, 7
        %v670 = vsub.s32 %v667, %v669
        %v671 = vrot.slane %v663, %v670
        %v673 = vunpack.c.l.s4 1934713408
        %v674 = vunpack.c.0.s8 %v673
        %v675 = vlaneseq
        %v676 = vshrl.u32 %v675, 7
        %v677 = vsub.s32 %v674, %v676
        %v678 = vrot.slane %v664, %v677
        %v679 = vcombine.low %v646, %v662
        %v680 = vcombine.high %v646, %v662
        %v682 = vunpack.c.l.s4 1934713408
        %v683 = vunpack.c.0.s8 %v682
        %v684 = vlaneseq
        %v685 = vshrl.u32 %v684, 7
        %v686 = vsub.s32 %v683, %v685
        %v687 = vrot.slane %v679, %v686
        %v689 = vunpack.c.l.s4 1934713408
        %v690 = vunpack.c.0.s8 %v689
        %v691 = vlaneseq
        %v692 = vshrl.u32 %v691, 7
        %v693 = vsub.s32 %v690, %v692
        %v694 = vrot.slane %v680, %v693
        %v695 = vcombine.high %v671, 0.0
        %v696 = vcombine.high %v678, 0.0
        %v697 = vcombine.high %v687, 0.0
        %v698 = vcombine.high %v694, 0.0
        %700 = vrot.lane.b32.xlu0 %v695, 16
        %v701 = vpop.permute.xlu0 %700
        %704 = vrot.lane.b32.xlu0 %v678, 32
        %v705 = vpop.permute.xlu0 %704
        %708 = vrot.lane.b32.xlu0 %v696, 48
        %v709 = vpop.permute.xlu0 %708
        %712 = vrot.lane.b32.xlu0 %v687, 64
        %v713 = vpop.permute.xlu0 %712
        %716 = vrot.lane.b32.xlu0 %v697, 80
        %v717 = vpop.permute.xlu0 %716
        %720 = vrot.lane.b32.xlu0 %v694, 96
        %v721 = vpop.permute.xlu0 %720
        %724 = vrot.lane.b32.xlu0 %v698, 112
        %v725 = vpop.permute.xlu0 %724
        %v727 = vsel %vm258, %v671, %v701
        %v728 = vsel %vm260, %v727, %v705
        %v729 = vsel %vm262, %v728, %v709
        %v730 = vsel %vm264, %v729, %v713
        %v731 = vsel %vm266, %v730, %v717
        %v732 = vsel %vm268, %v731, %v721
        %v733 = vsel %vm270, %v732, %v725
        %734 = vrot.lane.b32.xlu0 %v508, 126
        %v735 = vpop.permute.xlu0 %734
        %736 = vrot.lane.b32.xlu0 %v509, 126
        %v737 = vpop.permute.xlu0 %736
        %738 = vrot.lane.b32.xlu0 %v510, 126
        %v739 = vpop.permute.xlu0 %738
        %740 = vrot.lane.b32.xlu0 %v511, 126
        %v741 = vpop.permute.xlu0 %740
        %v746 = vcombine.low %v735, %v739
        %v747 = vcombine.high %v735, %v739
        %v749 = vunpack.c.l.s4 1983009808
        %v750 = vunpack.c.0.s8 %v749
        %v751 = vlaneseq
        %v752 = vshrl.u32 %v751, 7
        %v753 = vsub.s32 %v750, %v752
        %v754 = vrot.slane %v746, %v753
        %v756 = vunpack.c.l.s4 1983009808
        %v757 = vunpack.c.0.s8 %v756
        %v758 = vlaneseq
        %v759 = vshrl.u32 %v758, 7
        %v760 = vsub.s32 %v757, %v759
        %v761 = vrot.slane %v747, %v760
        %v762 = vcombine.low %v737, %v741
        %v763 = vcombine.high %v737, %v741
        %v765 = vunpack.c.l.s4 1983009808
        %v766 = vunpack.c.0.s8 %v765
        %v767 = vlaneseq
        %v768 = vshrl.u32 %v767, 7
        %v769 = vsub.s32 %v766, %v768
        %v770 = vrot.slane %v762, %v769
        %v772 = vunpack.c.l.s4 1983009808
        %v773 = vunpack.c.0.s8 %v772
        %v774 = vlaneseq
        %v775 = vshrl.u32 %v774, 7
        %v776 = vsub.s32 %v773, %v775
        %v777 = vrot.slane %v763, %v776
        %v778 = vcombine.low %v754, %v770
        %v779 = vcombine.high %v754, %v770
        %v781 = vunpack.c.l.s4 1934713408
        %v782 = vunpack.c.0.s8 %v781
        %v783 = vlaneseq
        %v784 = vshrl.u32 %v783, 7
        %v785 = vsub.s32 %v782, %v784
        %v786 = vrot.slane %v778, %v785
        %v788 = vunpack.c.l.s4 1934713408
        %v789 = vunpack.c.0.s8 %v788
        %v790 = vlaneseq
        %v791 = vshrl.u32 %v790, 7
        %v792 = vsub.s32 %v789, %v791
        %v793 = vrot.slane %v779, %v792
        %v794 = vcombine.low %v761, %v777
        %v795 = vcombine.high %v761, %v777
        %v797 = vunpack.c.l.s4 1934713408
        %v798 = vunpack.c.0.s8 %v797
        %v799 = vlaneseq
        %v800 = vshrl.u32 %v799, 7
        %v801 = vsub.s32 %v798, %v800
        %v802 = vrot.slane %v794, %v801
        %v804 = vunpack.c.l.s4 1934713408
        %v805 = vunpack.c.0.s8 %v804
        %v806 = vlaneseq
        %v807 = vshrl.u32 %v806, 7
        %v808 = vsub.s32 %v805, %v807
        %v809 = vrot.slane %v795, %v808
        %v810 = vcombine.high %v786, 0.0
        %v811 = vcombine.high %v793, 0.0
        %v812 = vcombine.high %v802, 0.0
        %v813 = vcombine.high %v809, 0.0
        %815 = vrot.lane.b32.xlu0 %v810, 16
        %v816 = vpop.permute.xlu0 %815
        %819 = vrot.lane.b32.xlu0 %v793, 32
        %v820 = vpop.permute.xlu0 %819
        %823 = vrot.lane.b32.xlu0 %v811, 48
        %v824 = vpop.permute.xlu0 %823
        %827 = vrot.lane.b32.xlu0 %v802, 64
        %v828 = vpop.permute.xlu0 %827
        %831 = vrot.lane.b32.xlu0 %v812, 80
        %v832 = vpop.permute.xlu0 %831
        %835 = vrot.lane.b32.xlu0 %v809, 96
        %v836 = vpop.permute.xlu0 %835
        %839 = vrot.lane.b32.xlu0 %v813, 112
        %v840 = vpop.permute.xlu0 %839
        %v842 = vsel %vm258, %v786, %v816
        %v843 = vsel %vm260, %v842, %v820
        %v844 = vsel %vm262, %v843, %v824
        %v845 = vsel %vm264, %v844, %v828
        %v846 = vsel %vm266, %v845, %v832
        %v847 = vsel %vm268, %v846, %v836
        %v848 = vsel %vm270, %v847, %v840
        %s849 = sadd.s32 %s156, 2
        %s850 = scalar_lea.vmem %s155, %s849
        %v851 = vld [vmem:[%s850] sm:$0xff]
        %v852 = vld [vmem:[%s850 + $0x18] sm:$0xff]
        %v853 = vld [vmem:[%s850 + $0x30] sm:$0xff]
        %v854 = vld [vmem:[%s850 + $0x48] sm:$0xff]
        %v855 = vcombine.low %v851, %v853
        %v856 = vcombine.high %v851, %v853
        %v858 = vunpack.c.l.s4 1983009808
        %v859 = vunpack.c.0.s8 %v858
        %v860 = vlaneseq
        %v861 = vshrl.u32 %v860, 7
        %v862 = vsub.s32 %v859, %v861
        %v863 = vrot.slane %v855, %v862
        %v865 = vunpack.c.l.s4 1983009808
        %v866 = vunpack.c.0.s8 %v865
        %v867 = vlaneseq
        %v868 = vshrl.u32 %v867, 7
        %v869 = vsub.s32 %v866, %v868
        %v870 = vrot.slane %v856, %v869
        %v871 = vcombine.low %v852, %v854
        %v872 = vcombine.high %v852, %v854
        %v874 = vunpack.c.l.s4 1983009808
        %v875 = vunpack.c.0.s8 %v874
        %v876 = vlaneseq
        %v877 = vshrl.u32 %v876, 7
        %v878 = vsub.s32 %v875, %v877
        %v879 = vrot.slane %v871, %v878
        %v881 = vunpack.c.l.s4 1983009808
        %v882 = vunpack.c.0.s8 %v881
        %v883 = vlaneseq
        %v884 = vshrl.u32 %v883, 7
        %v885 = vsub.s32 %v882, %v884
        %v886 = vrot.slane %v872, %v885
        %v887 = vcombine.low %v863, %v879
        %v888 = vcombine.high %v863, %v879
        %v890 = vunpack.c.l.s4 1934713408
        %v891 = vunpack.c.0.s8 %v890
        %v892 = vlaneseq
        %v893 = vshrl.u32 %v892, 7
        %v894 = vsub.s32 %v891, %v893
        %v895 = vrot.slane %v887, %v894
        %v897 = vunpack.c.l.s4 1934713408
        %v898 = vunpack.c.0.s8 %v897
        %v899 = vlaneseq
        %v900 = vshrl.u32 %v899, 7
        %v901 = vsub.s32 %v898, %v900
        %v902 = vrot.slane %v888, %v901
        %v903 = vcombine.low %v870, %v886
        %v904 = vcombine.high %v870, %v886
        %v906 = vunpack.c.l.s4 1934713408
        %v907 = vunpack.c.0.s8 %v906
        %v908 = vlaneseq
        %v909 = vshrl.u32 %v908, 7
        %v910 = vsub.s32 %v907, %v909
        %v911 = vrot.slane %v903, %v910
        %v913 = vunpack.c.l.s4 1934713408
        %v914 = vunpack.c.0.s8 %v913
        %v915 = vlaneseq
        %v916 = vshrl.u32 %v915, 7
        %v917 = vsub.s32 %v914, %v916
        %v918 = vrot.slane %v904, %v917
        %v919 = vcombine.high %v895, 0.0
        %v920 = vcombine.high %v902, 0.0
        %v921 = vcombine.high %v911, 0.0
        %v922 = vcombine.high %v918, 0.0
        %924 = vrot.lane.b32.xlu0 %v919, 16
        %v925 = vpop.permute.xlu0 %924
        %928 = vrot.lane.b32.xlu0 %v902, 32
        %v929 = vpop.permute.xlu0 %928
        %932 = vrot.lane.b32.xlu0 %v920, 48
        %v933 = vpop.permute.xlu0 %932
        %936 = vrot.lane.b32.xlu0 %v911, 64
        %v937 = vpop.permute.xlu0 %936
        %940 = vrot.lane.b32.xlu0 %v921, 80
        %v941 = vpop.permute.xlu0 %940
        %944 = vrot.lane.b32.xlu0 %v918, 96
        %v945 = vpop.permute.xlu0 %944
        %948 = vrot.lane.b32.xlu0 %v922, 112
        %v949 = vpop.permute.xlu0 %948
        %v951 = vsel %vm258, %v895, %v925
        %v952 = vsel %vm260, %v951, %v929
        %v953 = vsel %vm262, %v952, %v933
        %v954 = vsel %vm264, %v953, %v937
        %v955 = vsel %vm266, %v954, %v941
        %v956 = vsel %vm268, %v955, %v945
        %v957 = vsel %vm270, %v956, %v949
        %962 = vrot.lane.b32.xlu0 %v851, 127
        %v963 = vpop.permute.xlu0 %962
        %964 = vrot.lane.b32.xlu0 %v852, 127
        %v965 = vpop.permute.xlu0 %964
        %966 = vrot.lane.b32.xlu0 %v853, 127
        %v967 = vpop.permute.xlu0 %966
        %968 = vrot.lane.b32.xlu0 %v854, 127
        %v969 = vpop.permute.xlu0 %968
        %v974 = vcombine.low %v963, %v967
        %v975 = vcombine.high %v963, %v967
        %v977 = vunpack.c.l.s4 1983009808
        %v978 = vunpack.c.0.s8 %v977
        %v979 = vlaneseq
        %v980 = vshrl.u32 %v979, 7
        %v981 = vsub.s32 %v978, %v980
        %v982 = vrot.slane %v974, %v981
        %v984 = vunpack.c.l.s4 1983009808
        %v985 = vunpack.c.0.s8 %v984
        %v986 = vlaneseq
        %v987 = vshrl.u32 %v986, 7
        %v988 = vsub.s32 %v985, %v987
        %v989 = vrot.slane %v975, %v988
        %v990 = vcombine.low %v965, %v969
        %v991 = vcombine.high %v965, %v969
        %v993 = vunpack.c.l.s4 1983009808
        %v994 = vunpack.c.0.s8 %v993
        %v995 = vlaneseq
        %v996 = vshrl.u32 %v995, 7
        %v997 = vsub.s32 %v994, %v996
        %v998 = vrot.slane %v990, %v997
        %v1000 = vunpack.c.l.s4 1983009808
        %v1001 = vunpack.c.0.s8 %v1000
        %v1002 = vlaneseq
        %v1003 = vshrl.u32 %v1002, 7
        %v1004 = vsub.s32 %v1001, %v1003
        %v1005 = vrot.slane %v991, %v1004
        %v1006 = vcombine.low %v982, %v998
        %v1007 = vcombine.high %v982, %v998
        %v1009 = vunpack.c.l.s4 1934713408
        %v1010 = vunpack.c.0.s8 %v1009
        %v1011 = vlaneseq
        %v1012 = vshrl.u32 %v1011, 7
        %v1013 = vsub.s32 %v1010, %v1012
        %v1014 = vrot.slane %v1006, %v1013
        %v1016 = vunpack.c.l.s4 1934713408
        %v1017 = vunpack.c.0.s8 %v1016
        %v1018 = vlaneseq
        %v1019 = vshrl.u32 %v1018, 7
        %v1020 = vsub.s32 %v1017, %v1019
        %v1021 = vrot.slane %v1007, %v1020
        %v1022 = vcombine.low %v989, %v1005
        %v1023 = vcombine.high %v989, %v1005
        %v1025 = vunpack.c.l.s4 1934713408
        %v1026 = vunpack.c.0.s8 %v1025
        %v1027 = vlaneseq
        %v1028 = vshrl.u32 %v1027, 7
        %v1029 = vsub.s32 %v1026, %v1028
        %v1030 = vrot.slane %v1022, %v1029
        %v1032 = vunpack.c.l.s4 1934713408
        %v1033 = vunpack.c.0.s8 %v1032
        %v1034 = vlaneseq
        %v1035 = vshrl.u32 %v1034, 7
        %v1036 = vsub.s32 %v1033, %v1035
        %v1037 = vrot.slane %v1023, %v1036
        %v1038 = vcombine.high %v1014, 0.0
        %v1039 = vcombine.high %v1021, 0.0
        %v1040 = vcombine.high %v1030, 0.0
        %v1041 = vcombine.high %v1037, 0.0
        %1043 = vrot.lane.b32.xlu0 %v1038, 16
        %v1044 = vpop.permute.xlu0 %1043
        %1047 = vrot.lane.b32.xlu0 %v1021, 32
        %v1048 = vpop.permute.xlu0 %1047
        %1051 = vrot.lane.b32.xlu0 %v1039, 48
        %v1052 = vpop.permute.xlu0 %1051
        %1055 = vrot.lane.b32.xlu0 %v1030, 64
        %v1056 = vpop.permute.xlu0 %1055
        %1059 = vrot.lane.b32.xlu0 %v1040, 80
        %v1060 = vpop.permute.xlu0 %1059
        %1063 = vrot.lane.b32.xlu0 %v1037, 96
        %v1064 = vpop.permute.xlu0 %1063
        %1067 = vrot.lane.b32.xlu0 %v1041, 112
        %v1068 = vpop.permute.xlu0 %1067
        %v1070 = vsel %vm258, %v1014, %v1044
        %v1071 = vsel %vm260, %v1070, %v1048
        %v1072 = vsel %vm262, %v1071, %v1052
        %v1073 = vsel %vm264, %v1072, %v1056
        %v1074 = vsel %vm266, %v1073, %v1060
        %v1075 = vsel %vm268, %v1074, %v1064
        %v1076 = vsel %vm270, %v1075, %v1068
        %1077 = vrot.lane.b32.xlu0 %v851, 126
        %v1078 = vpop.permute.xlu0 %1077
        %1079 = vrot.lane.b32.xlu0 %v852, 126
        %v1080 = vpop.permute.xlu0 %1079
        %1081 = vrot.lane.b32.xlu0 %v853, 126
        %v1082 = vpop.permute.xlu0 %1081
        %1083 = vrot.lane.b32.xlu0 %v854, 126
        %v1084 = vpop.permute.xlu0 %1083
        %v1089 = vcombine.low %v1078, %v1082
        %v1090 = vcombine.high %v1078, %v1082
        %v1092 = vunpack.c.l.s4 1983009808
        %v1093 = vunpack.c.0.s8 %v1092
        %v1094 = vlaneseq
        %v1095 = vshrl.u32 %v1094, 7
        %v1096 = vsub.s32 %v1093, %v1095
        %v1097 = vrot.slane %v1089, %v1096
        %v1099 = vunpack.c.l.s4 1983009808
        %v1100 = vunpack.c.0.s8 %v1099
        %v1101 = vlaneseq
        %v1102 = vshrl.u32 %v1101, 7
        %v1103 = vsub.s32 %v1100, %v1102
        %v1104 = vrot.slane %v1090, %v1103
        %v1105 = vcombine.low %v1080, %v1084
        %v1106 = vcombine.high %v1080, %v1084
        %v1108 = vunpack.c.l.s4 1983009808
        %v1109 = vunpack.c.0.s8 %v1108
        %v1110 = vlaneseq
        %v1111 = vshrl.u32 %v1110, 7
        %v1112 = vsub.s32 %v1109, %v1111
        %v1113 = vrot.slane %v1105, %v1112
        %v1115 = vunpack.c.l.s4 1983009808
        %v1116 = vunpack.c.0.s8 %v1115
        %v1117 = vlaneseq
        %v1118 = vshrl.u32 %v1117, 7
        %v1119 = vsub.s32 %v1116, %v1118
        %v1120 = vrot.slane %v1106, %v1119
        %v1121 = vcombine.low %v1097, %v1113
        %v1122 = vcombine.high %v1097, %v1113
        %v1124 = vunpack.c.l.s4 1934713408
        %v1125 = vunpack.c.0.s8 %v1124
        %v1126 = vlaneseq
        %v1127 = vshrl.u32 %v1126, 7
        %v1128 = vsub.s32 %v1125, %v1127
        %v1129 = vrot.slane %v1121, %v1128
        %v1131 = vunpack.c.l.s4 1934713408
        %v1132 = vunpack.c.0.s8 %v1131
        %v1133 = vlaneseq
        %v1134 = vshrl.u32 %v1133, 7
        %v1135 = vsub.s32 %v1132, %v1134
        %v1136 = vrot.slane %v1122, %v1135
        %v1137 = vcombine.low %v1104, %v1120
        %v1138 = vcombine.high %v1104, %v1120
        %v1140 = vunpack.c.l.s4 1934713408
        %v1141 = vunpack.c.0.s8 %v1140
        %v1142 = vlaneseq
        %v1143 = vshrl.u32 %v1142, 7
        %v1144 = vsub.s32 %v1141, %v1143
        %v1145 = vrot.slane %v1137, %v1144
        %v1147 = vunpack.c.l.s4 1934713408
        %v1148 = vunpack.c.0.s8 %v1147
        %v1149 = vlaneseq
        %v1150 = vshrl.u32 %v1149, 7
        %v1151 = vsub.s32 %v1148, %v1150
        %v1152 = vrot.slane %v1138, %v1151
        %v1153 = vcombine.high %v1129, 0.0
        %v1154 = vcombine.high %v1136, 0.0
        %v1155 = vcombine.high %v1145, 0.0
        %v1156 = vcombine.high %v1152, 0.0
        %1158 = vrot.lane.b32.xlu0 %v1153, 16
        %v1159 = vpop.permute.xlu0 %1158
        %1162 = vrot.lane.b32.xlu0 %v1136, 32
        %v1163 = vpop.permute.xlu0 %1162
        %1166 = vrot.lane.b32.xlu0 %v1154, 48
        %v1167 = vpop.permute.xlu0 %1166
        %1170 = vrot.lane.b32.xlu0 %v1145, 64
        %v1171 = vpop.permute.xlu0 %1170
        %1174 = vrot.lane.b32.xlu0 %v1155, 80
        %v1175 = vpop.permute.xlu0 %1174
        %1178 = vrot.lane.b32.xlu0 %v1152, 96
        %v1179 = vpop.permute.xlu0 %1178
        %1182 = vrot.lane.b32.xlu0 %v1156, 112
        %v1183 = vpop.permute.xlu0 %1182
        %v1185 = vsel %vm258, %v1129, %v1159
        %v1186 = vsel %vm260, %v1185, %v1163
        %v1187 = vsel %vm262, %v1186, %v1167
        %v1188 = vsel %vm264, %v1187, %v1171
        %v1189 = vsel %vm266, %v1188, %v1175
        %v1190 = vsel %vm268, %v1189, %v1179
        %v1191 = vsel %vm270, %v1190, %v1183
        %v1193 = vrot.slane %v390, 4
        %v1196 = vrot.slane %v614, 4
        %v1199 = vrot.slane %v848, 4
        %v1202 = vrot.slane %v1076, 4
        %vm1204 = vcmask 1043456
        %v1205 = vsel %vm1204, %v271, %v1193
        %v1206 = vsel %vm1204, %v505, %v1196
        %v1207 = vsel %vm1204, %v733, %v1199
        %v1208 = vsel %vm1204, %v957, %v1202
        %v1209 = vld [vmem:[%s1] sm:$0xff]
        %vm1210 = vcmask 293888
        %v1212 = vsel %vm1210, %v1209, 0
        %v1215 = vsel %vm1204, %v1191, 0
        %1217 = vmatprep.subr.mxu0 0.0
        %1218 = vmatpush1.msra.mxu0 %v1205
        %1219 = vmatprep.subr.mxu0 0.0
        %1220 = vmatpush1.msra.mxu0 %v1206
        %1221 = vmatprep.subr.mxu0 0.0
        %1222 = vmatpush1.msra.mxu0 %v1207
        %1223 = vmatprep.subr.mxu0 0.0
        %1224 = vmatpush1.msra.mxu0 %v1208
        %1225 = vmatprep.subr.mxu0 0.0
        %1226 = vmatpush1.msra.mxu0 %v1215
        %1227 = vmatprep.subr.mxu0 0.0
        %1228 = vmatpush1.msra.mxu0 0.0
        %1229 = vmatprep.subr.mxu0 0.0
        %1230 = vmatpush1.msra.mxu0 0.0
        %1231 = vmatprep.subr.mxu0 0.0
        %1232 = vmatpush1.msra.mxu0 0.0
        %1233 = vmatprep.subr.mxu0 0.0
        %1234 = vmatpush1.msra.mxu0 0.0
        %1235 = vmatprep.subr.mxu0 0.0
        %1236 = vmatpush1.msra.mxu0 0.0
        %1237 = vmatprep.subr.mxu0 0.0
        %1238 = vmatpush1.msra.mxu0 0.0
        %1239 = vmatprep.subr.mxu0 0.0
        %1240 = vmatpush1.msra.mxu0 0.0
        %1241 = vmatprep.subr.mxu0 0.0
        %1242 = vmatpush1.msra.mxu0 0.0
        %1243 = vmatprep.subr.mxu0 0.0
        %1244 = vmatpush1.msra.mxu0 0.0
        %1245 = vmatprep.subr.mxu0 0.0
        %1246 = vmatpush1.msra.mxu0 0.0
        %1247 = vmatprep.subr.mxu0 0.0
        %1248 = vmatpush1.msra.mxu0 0.0
        %1249 = vmatprep.subr.mxu0 0.0
        %1250 = vmatpush1.msra.mxu0 0.0
        %1251 = vmatprep.subr.mxu0 0.0
        %1252 = vmatpush1.msra.mxu0 0.0
        %1253 = vmatprep.subr.mxu0 0.0
        %1254 = vmatpush1.msra.mxu0 0.0
        %1255 = vmatprep.subr.mxu0 0.0
        %1256 = vmatpush1.msra.mxu0 0.0
        %1257 = vmatprep.subr.mxu0 0.0
        %1258 = vmatpush1.msra.mxu0 0.0
        %1259 = vmatprep.subr.mxu0 0.0
        %1260 = vmatpush1.msra.mxu0 0.0
        %1261 = vmatprep.subr.mxu0 0.0
        %1262 = vmatpush1.msra.mxu0 0.0
        %1263 = vmatprep.subr.mxu0 0.0
        %1264 = vmatpush1.msra.mxu0 0.0
        %1265 = vmatprep.subr.mxu0 0.0
        %1266 = vmatpush1.msra.mxu0 0.0
        %1267 = vmatprep.subr.mxu0 0.0
        %1268 = vmatpush1.msra.mxu0 0.0
        %1269 = vmatprep.subr.mxu0 0.0
        %1270 = vmatpush1.msra.mxu0 0.0
        %1271 = vmatprep.subr.mxu0 0.0
        %1272 = vmatpush1.msra.mxu0 0.0
        %1273 = vmatprep.subr.mxu0 0.0
        %1274 = vmatpush1.msra.mxu0 0.0
        %1275 = vmatprep.subr.mxu0 0.0
        %1276 = vmatpush1.msra.mxu0 0.0
        %1277 = vmatprep.subr.mxu0 0.0
        %1278 = vmatpush1.msra.mxu0 0.0
        %1279 = vmatprep.subr.mxu0 0.0
        %1280 = vmatpush1.msra.mxu0 0.0
        %1281 = vmatprep.mubr.f32.mxu0 0.0
        %1282 = vmatmul.mubr.f32.gmra.mrb[0].mxu0 %v1212
        %v1283 = vpop.f32.mrb[0].mxu0
        %v1284 = vadd.f32 0.0, %v1283
        %v1285 = vpop.f32.mrb[0].mxu0
        %1286 = vdwg.mxu0
        %1287 = vst [vmem:[%s150] sm:$0xff] %v1284
        %s1288 = sand.u32 %s85, 1
        %s1289 = scalar_lea.sflag [#allocation3], %s1288
        %s1290 = sand.u32 %s85, 1
        %s1291 = smul.addr %s1290, 8
        %s1292 = scalar_lea.vmem [#allocation2], %s1291
        // Predicated region
        $region29: #{tpu_custom_call.1} parent=27 // pred_check
          %p1293 = pneg %p95
        $region30: #{tpu_custom_call.1} parent=27 // pred_check_branch
          %1295 = sbr.rel (%p1293) target = $region32
        $region31: #{tpu_custom_call.1} parent=27 // pred_region
          %s1297 = ssub.s32 128, 128
          %1298 = vsyncadd %s1289, %s1297
          %s1299 = smul.addr %s20, 2
          %s1300 = sadd.s32 %s21, %s1299
          %s1301 = smul.addr %s1300, 128
          %s1302 = scalar_lea.hbm %s2, %s1301
          %s1304 = sshll.u32 %s1292, 4
          %s1305 = int_to_ptr.vmem [resolvable:$true] %s1304
          %1307 = dma.vmem_to_hbm [thread:$0]  %s1305, 128, %s1302, %s1289
        $region32: #{tpu_custom_call.1} parent=27 // pred_fallthru
          _
      $region28: #{tpu_custom_call.1} parent=5 // pred_fallthru
        _
      %p1308 = scmp.le.s32.totalorder 2, %s11
      // Predicated region
      $region33: #{tpu_custom_call.1} parent=5 // pred_check
        %p1309 = pneg %p1308
      $region34: #{tpu_custom_call.1} parent=5 // pred_check_branch
        %1311 = sbr.rel (%p1309) target = $region36
      $region35: #{tpu_custom_call.1} parent=5 // pred_region
        %s1312 = ssub.s32 %s11, 2
        // Predicated region
        $region37: #{tpu_custom_call.1} parent=35 // pred_check
          %p1313 = pneg %p101
        $region38: #{tpu_custom_call.1} parent=35 // pred_check_branch
          %1315 = sbr.rel (%p1313) target = $region40
        $region39: #{tpu_custom_call.1} parent=35 // pred_region
          %s1316 = sand.u32 %s86, 1
          %s1317 = scalar_lea.sflag [#allocation3], %s1316
          %s1318 = sand.u32 %s86, 1
          %s1319 = smul.addr %s1318, 8
          %s1320 = scalar_lea.vmem [#allocation2], %s1319
          %1321 = dma.done %s1317, 128
        $region40: #{tpu_custom_call.1} parent=35 // pred_fallthru
          _
      $region36: #{tpu_custom_call.1} parent=5 // pred_fallthru
        _
    $region6: #{tpu_custom_call.1} parent=1 // loop_footer
      %s15 = sadd.s32 1, %s11
    $region7: #{tpu_custom_call.1} parent=1 // loop_footer_branch
      %10 = sbr.rel target = $region3
    $region8: #{tpu_custom_call.1} parent=1 // loop_exit
      _
    %1322 = vsyncpa [#allocation3], 1
    %s1323 = scalar_lea.sflag [#allocation3], 1
    %1324 = vsyncpa %s1323, 1

</llo_original>
